<compile_context>
chip_gen: v7x
topology: tpu7x:2x2x1
jax: 0.10.0
libtpu: 0.0.40
codegen_flags: <defaults>
</compile_context>

<pallas_src>
import functools

import jax
import jax.numpy as jnp
from jax.experimental import pallas as pl
from jax.experimental.pallas import tpu as pltpu

TIME_STEPS = 24
RECURRENT_MAX = 2.0 ** (1.0 / TIME_STEPS)
RECURRENT_MIN = 0.5 ** (1.0 / TIME_STEPS)


def indrnn_net_kernel(T, x_ref, w1_ref, u1_ref, b1_ref,
                      w2_ref, u2_ref, b2_ref,
                      wl_ref, bl_ref,
                      o_ref,
                      h1_all_ref):
    TB, _ = x_ref.shape
    B = TB // T
    H = w1_ref.shape[1]

    # (1) Batched layer-1 input projection: ONE (T*B, Din) @ (Din, H) matmul.
    #     x_ref rows are timestep-major: row t*B + b  <->  x[b, t, :].
    #     Fold the bias in here (one big VPU add) so it leaves the serial chain.
    xw1 = (jnp.dot(x_ref[...], w1_ref[...], preferred_element_type=jnp.float32)
           + jnp.broadcast_to(b1_ref[...], (TB, H)))

    # Hoist the (1, H) -> (B, H) broadcasts out of the time loops.
    u1 = jnp.broadcast_to(u1_ref[...], (B, H))
    u2 = jnp.broadcast_to(u2_ref[...], (B, H))

    # (2) Layer-1 recurrence: pure VPU, fully unrolled (T is static & small).
    #     Per-step serial chain is just mul -> add -> max.
    h1 = jnp.zeros((B, H), jnp.float32)
    for t in range(T):
        h1 = jnp.maximum(xw1[t * B:(t + 1) * B, :] + u1 * h1, 0.0)
        h1_all_ref[t * B:(t + 1) * B, :] = h1          # stack over time for (3)

    # (3) Batched layer-2 hidden projection: ONE (T*B, H) @ (H, H) matmul (+ bias fold).
    h1w2 = (jnp.dot(h1_all_ref[...], w2_ref[...], preferred_element_type=jnp.float32)
            + jnp.broadcast_to(b2_ref[...], (TB, H)))

    # (4) Layer-2 recurrence: pure VPU, fully unrolled; only the last h2 is needed.
    h2 = jnp.zeros((B, H), jnp.float32)
    for t in range(T):
        h2 = jnp.maximum(h1w2[t * B:(t + 1) * B, :] + u2 * h2, 0.0)

    # (5) Final Linear on the last timestep's hidden state; single output write.
    o_ref[...] = (jnp.dot(h2, wl_ref[...], preferred_element_type=jnp.float32)
                  + bl_ref[...]).astype(o_ref.dtype)


def indrnn_net(x, w1, u1, b1, w2, u2, b2, wl, bl):
    B, T, Din = x.shape
    H = w1.shape[1]
    O = wl.shape[1]

    # Layout plumbing only (free, outside the kernel): timestep-major 2-D view so the
    # whole layer-1 input projection is a single well-shaped matmul.
    x_tb = jnp.transpose(x, (1, 0, 2)).reshape(T * B, Din)

    vmem = pl.BlockSpec(memory_space=pltpu.MemorySpace.VMEM)
    return pl.pallas_call(
        functools.partial(indrnn_net_kernel, T),
        out_shape=jax.ShapeDtypeStruct((B, O), jnp.float32),
        in_specs=[vmem] * 9,                                   # whole arrays in VMEM, no pipelining
        out_specs=vmem,
        scratch_shapes=[pltpu.VMEM((T * B, H), jnp.float32)],  # stacked h1 over time
    )(x_tb, w1, u1, b1, w2, u2, b2, wl, bl)


def indrnn_net_ref(x, w1, u1, b1, w2, u2, b2, wl, bl):
    """Pure-JAX reference of the same forward pass."""
    B, T, _ = x.shape
    H = w1.shape[1]
    h1 = jnp.zeros((B, H), jnp.float32)
    h2 = jnp.zeros((B, H), jnp.float32)
    for t in range(T):
        h1 = jnp.maximum(x[:, t, :] @ w1 + u1 * h1 + b1, 0.0)
        h2 = jnp.maximum(h1 @ w2 + u2 * h2 + b2, 0.0)
    return h2 @ wl + bl


if __name__ == "__main__":
    # Small shapes consistent with the module: batch=4, seq=TIME_STEPS=24,
    # input_size=16, hidden_size=32, n_classes=10.
    B, T, Din, H, O = 4, TIME_STEPS, 16, 32, 10

    key = jax.random.PRNGKey(0)
    kx, kw1, kw2, ku1, ku2, kwl = jax.random.split(key, 6)

    x = jax.random.normal(kx, (B, T, Din), jnp.float32)

    # Deterministic parameter init (shapes implied by the module's __init__):
    w1 = jax.random.normal(kw1, (Din, H), jnp.float32) * 0.1             # input->hidden, layer 1
    u1 = jax.random.uniform(ku1, (1, H), jnp.float32,
                            minval=0.0, maxval=RECURRENT_MAX)            # recurrent_inits[0]
    b1 = jnp.zeros((1, H), jnp.float32)
    w2 = jax.random.normal(kw2, (H, H), jnp.float32) * 0.1               # hidden->hidden, layer 2
    u2 = jax.random.uniform(ku2, (1, H), jnp.float32,
                            minval=RECURRENT_MIN, maxval=RECURRENT_MAX)  # recurrent_inits[-1]
    b2 = jnp.zeros((1, H), jnp.float32)
    wl = jax.random.normal(kwl, (H, O), jnp.float32) * 0.01              # lin.weight.normal_(0, 0.01)
    bl = jnp.full((1, O), 0.1, jnp.float32)                              # lin.bias.fill_(0.1)

    out = indrnn_net(x, w1, u1, b1, w2, u2, b2, wl, bl)
    out = jax.block_until_ready(out)

    ref = indrnn_net_ref(x, w1, u1, b1, w2, u2, b2, wl, bl)
    assert out.shape == (B, O)
    assert jnp.allclose(out, ref, atol=1e-4, rtol=1e-4), "mismatch vs JAX reference"

    print("KERNEL_OK")
</pallas_src>

<mosaic_0001>
module attributes {stable_mosaic.version = 11 : i64} {
  func.func @indrnn_net_kernel(%arg0: memref<96x16xf32, #tpu.memory_space<vmem>>, %arg1: memref<16x32xf32, #tpu.memory_space<vmem>>, %arg2: memref<1x32xf32, #tpu.memory_space<vmem>>, %arg3: memref<1x32xf32, #tpu.memory_space<vmem>>, %arg4: memref<32x32xf32, #tpu.memory_space<vmem>>, %arg5: memref<1x32xf32, #tpu.memory_space<vmem>>, %arg6: memref<1x32xf32, #tpu.memory_space<vmem>>, %arg7: memref<32x10xf32, #tpu.memory_space<vmem>>, %arg8: memref<1x10xf32, #tpu.memory_space<vmem>>, %arg9: memref<4x10xf32, #tpu.memory_space<vmem>>, %arg10: memref<96x32xf32, #tpu.memory_space<vmem>>) attributes {dimension_semantics = [], scalar_prefetch = 0 : i64, scratch_operands = 1 : i64, tpu.core_type = #tpu.core_type<tc>} {
    %c0 = arith.constant 0 : index
    %c0_0 = arith.constant 0 : index
    %0 = vector.load %arg0[%c0, %c0_0] : memref<96x16xf32, #tpu.memory_space<vmem>>, vector<96x16xf32>
    %c0_1 = arith.constant 0 : index
    %c0_2 = arith.constant 0 : index
    %1 = vector.load %arg1[%c0_1, %c0_2] : memref<16x32xf32, #tpu.memory_space<vmem>>, vector<16x32xf32>
    %cst = arith.constant dense<0.000000e+00> : vector<96x32xf32>
    %2 = tpu.matmul %0, %1, %cst {dimension_numbers = #tpu.dot_dimension_numbers<[1], [0], [0], [1], [0, 0, 1, 1], [], []>} : vector<96x16xf32>, vector<16x32xf32>, vector<96x32xf32> -> vector<96x32xf32>
    %c0_3 = arith.constant 0 : index
    %c0_4 = arith.constant 0 : index
    %3 = vector.load %arg3[%c0_3, %c0_4] : memref<1x32xf32, #tpu.memory_space<vmem>>, vector<1x32xf32>
    %4 = vector.shape_cast %3 : vector<1x32xf32> to vector<1x32xf32>
    %5 = vector.broadcast %4 : vector<1x32xf32> to vector<96x32xf32>
    %6 = arith.addf %2, %5 : vector<96x32xf32>
    %c0_5 = arith.constant 0 : index
    %c0_6 = arith.constant 0 : index
    %7 = vector.load %arg2[%c0_5, %c0_6] : memref<1x32xf32, #tpu.memory_space<vmem>>, vector<1x32xf32>
    %8 = vector.shape_cast %7 : vector<1x32xf32> to vector<1x32xf32>
    %9 = vector.broadcast %8 : vector<1x32xf32> to vector<4x32xf32>
    %c0_7 = arith.constant 0 : index
    %c0_8 = arith.constant 0 : index
    %10 = vector.load %arg5[%c0_7, %c0_8] : memref<1x32xf32, #tpu.memory_space<vmem>>, vector<1x32xf32>
    %11 = vector.shape_cast %10 : vector<1x32xf32> to vector<1x32xf32>
    %12 = vector.broadcast %11 : vector<1x32xf32> to vector<4x32xf32>
    %cst_9 = arith.constant 0.000000e+00 : f32
    %13 = vector.broadcast %cst_9 : f32 to vector<4x32xf32>
    %14 = vector.extract_strided_slice %6 {offsets = [0, 0], sizes = [4, 32], strides = [1, 1]} : vector<96x32xf32> to vector<4x32xf32>
    %15 = arith.mulf %9, %13 : vector<4x32xf32>
    %16 = arith.addf %14, %15 : vector<4x32xf32>
    %cst_10 = arith.constant 0.000000e+00 : f32
    %17 = vector.broadcast %cst_10 : f32 to vector<4x32xf32>
    %18 = arith.maximumf %16, %17 : vector<4x32xf32>
    %c0_11 = arith.constant 0 : index
    %c0_12 = arith.constant 0 : index
    %19 = vector.load %arg10[%c0_11, %c0_12] : memref<96x32xf32, #tpu.memory_space<vmem>>, vector<4x32xf32>
    tpu.vector_store %arg10[%c0_11, %c0_12], %18 {strides = array<i32>} : memref<96x32xf32, #tpu.memory_space<vmem>>, vector<4x32xf32>,
    %20 = vector.extract_strided_slice %6 {offsets = [4, 0], sizes = [4, 32], strides = [1, 1]} : vector<96x32xf32> to vector<4x32xf32>
    %21 = arith.mulf %9, %18 : vector<4x32xf32>
    %22 = arith.addf %20, %21 : vector<4x32xf32>
    %cst_13 = arith.constant 0.000000e+00 : f32
    %23 = vector.broadcast %cst_13 : f32 to vector<4x32xf32>
    %24 = arith.maximumf %22, %23 : vector<4x32xf32>
    %c4 = arith.constant 4 : index
    %c0_14 = arith.constant 0 : index
    %25 = vector.load %arg10[%c4, %c0_14] : memref<96x32xf32, #tpu.memory_space<vmem>>, vector<4x32xf32>
    tpu.vector_store %arg10[%c4, %c0_14], %24 {strides = array<i32>} : memref<96x32xf32, #tpu.memory_space<vmem>>, vector<4x32xf32>,
    %26 = vector.extract_strided_slice %6 {offsets = [8, 0], sizes = [4, 32], strides = [1, 1]} : vector<96x32xf32> to vector<4x32xf32>
    %27 = arith.mulf %9, %24 : vector<4x32xf32>
    %28 = arith.addf %26, %27 : vector<4x32xf32>
    %cst_15 = arith.constant 0.000000e+00 : f32
    %29 = vector.broadcast %cst_15 : f32 to vector<4x32xf32>
    %30 = arith.maximumf %28, %29 : vector<4x32xf32>
    %c8 = arith.constant 8 : index
    %c0_16 = arith.constant 0 : index
    %31 = vector.load %arg10[%c8, %c0_16] : memref<96x32xf32, #tpu.memory_space<vmem>>, vector<4x32xf32>
    tpu.vector_store %arg10[%c8, %c0_16], %30 {strides = array<i32>} : memref<96x32xf32, #tpu.memory_space<vmem>>, vector<4x32xf32>,
    %32 = vector.extract_strided_slice %6 {offsets = [12, 0], sizes = [4, 32], strides = [1, 1]} : vector<96x32xf32> to vector<4x32xf32>
    %33 = arith.mulf %9, %30 : vector<4x32xf32>
    %34 = arith.addf %32, %33 : vector<4x32xf32>
    %cst_17 = arith.constant 0.000000e+00 : f32
    %35 = vector.broadcast %cst_17 : f32 to vector<4x32xf32>
    %36 = arith.maximumf %34, %35 : vector<4x32xf32>
    %c12 = arith.constant 12 : index
    %c0_18 = arith.constant 0 : index
    %37 = vector.load %arg10[%c12, %c0_18] : memref<96x32xf32, #tpu.memory_space<vmem>>, vector<4x32xf32>
    tpu.vector_store %arg10[%c12, %c0_18], %36 {strides = array<i32>} : memref<96x32xf32, #tpu.memory_space<vmem>>, vector<4x32xf32>,
    %38 = vector.extract_strided_slice %6 {offsets = [16, 0], sizes = [4, 32], strides = [1, 1]} : vector<96x32xf32> to vector<4x32xf32>
    %39 = arith.mulf %9, %36 : vector<4x32xf32>
    %40 = arith.addf %38, %39 : vector<4x32xf32>
    %cst_19 = arith.constant 0.000000e+00 : f32
    %41 = vector.broadcast %cst_19 : f32 to vector<4x32xf32>
    %42 = arith.maximumf %40, %41 : vector<4x32xf32>
    %c16 = arith.constant 16 : index
    %c0_20 = arith.constant 0 : index
    %43 = vector.load %arg10[%c16, %c0_20] : memref<96x32xf32, #tpu.memory_space<vmem>>, vector<4x32xf32>
    tpu.vector_store %arg10[%c16, %c0_20], %42 {strides = array<i32>} : memref<96x32xf32, #tpu.memory_space<vmem>>, vector<4x32xf32>,
    %44 = vector.extract_strided_slice %6 {offsets = [20, 0], sizes = [4, 32], strides = [1, 1]} : vector<96x32xf32> to vector<4x32xf32>
    %45 = arith.mulf %9, %42 : vector<4x32xf32>
    %46 = arith.addf %44, %45 : vector<4x32xf32>
    %cst_21 = arith.constant 0.000000e+00 : f32
    %47 = vector.broadcast %cst_21 : f32 to vector<4x32xf32>
    %48 = arith.maximumf %46, %47 : vector<4x32xf32>
    %c20 = arith.constant 20 : index
    %c0_22 = arith.constant 0 : index
    %49 = vector.load %arg10[%c20, %c0_22] : memref<96x32xf32, #tpu.memory_space<vmem>>, vector<4x32xf32>
    tpu.vector_store %arg10[%c20, %c0_22], %48 {strides = array<i32>} : memref<96x32xf32, #tpu.memory_space<vmem>>, vector<4x32xf32>,
    %50 = vector.extract_strided_slice %6 {offsets = [24, 0], sizes = [4, 32], strides = [1, 1]} : vector<96x32xf32> to vector<4x32xf32>
    %51 = arith.mulf %9, %48 : vector<4x32xf32>
    %52 = arith.addf %50, %51 : vector<4x32xf32>
    %cst_23 = arith.constant 0.000000e+00 : f32
    %53 = vector.broadcast %cst_23 : f32 to vector<4x32xf32>
    %54 = arith.maximumf %52, %53 : vector<4x32xf32>
    %c24 = arith.constant 24 : index
    %c0_24 = arith.constant 0 : index
    %55 = vector.load %arg10[%c24, %c0_24] : memref<96x32xf32, #tpu.memory_space<vmem>>, vector<4x32xf32>
    tpu.vector_store %arg10[%c24, %c0_24], %54 {strides = array<i32>} : memref<96x32xf32, #tpu.memory_space<vmem>>, vector<4x32xf32>,
    %56 = vector.extract_strided_slice %6 {offsets = [28, 0], sizes = [4, 32], strides = [1, 1]} : vector<96x32xf32> to vector<4x32xf32>
    %57 = arith.mulf %9, %54 : vector<4x32xf32>
    %58 = arith.addf %56, %57 : vector<4x32xf32>
    %cst_25 = arith.constant 0.000000e+00 : f32
    %59 = vector.broadcast %cst_25 : f32 to vector<4x32xf32>
    %60 = arith.maximumf %58, %59 : vector<4x32xf32>
    %c28 = arith.constant 28 : index
    %c0_26 = arith.constant 0 : index
    %61 = vector.load %arg10[%c28, %c0_26] : memref<96x32xf32, #tpu.memory_space<vmem>>, vector<4x32xf32>
    tpu.vector_store %arg10[%c28, %c0_26], %60 {strides = array<i32>} : memref<96x32xf32, #tpu.memory_space<vmem>>, vector<4x32xf32>,
    %62 = vector.extract_strided_slice %6 {offsets = [32, 0], sizes = [4, 32], strides = [1, 1]} : vector<96x32xf32> to vector<4x32xf32>
    %63 = arith.mulf %9, %60 : vector<4x32xf32>
    %64 = arith.addf %62, %63 : vector<4x32xf32>
    %cst_27 = arith.constant 0.000000e+00 : f32
    %65 = vector.broadcast %cst_27 : f32 to vector<4x32xf32>
    %66 = arith.maximumf %64, %65 : vector<4x32xf32>
    %c32 = arith.constant 32 : index
    %c0_28 = arith.constant 0 : index
    %67 = vector.load %arg10[%c32, %c0_28] : memref<96x32xf32, #tpu.memory_space<vmem>>, vector<4x32xf32>
    tpu.vector_store %arg10[%c32, %c0_28], %66 {strides = array<i32>} : memref<96x32xf32, #tpu.memory_space<vmem>>, vector<4x32xf32>,
    %68 = vector.extract_strided_slice %6 {offsets = [36, 0], sizes = [4, 32], strides = [1, 1]} : vector<96x32xf32> to vector<4x32xf32>
    %69 = arith.mulf %9, %66 : vector<4x32xf32>
    %70 = arith.addf %68, %69 : vector<4x32xf32>
    %cst_29 = arith.constant 0.000000e+00 : f32
    %71 = vector.broadcast %cst_29 : f32 to vector<4x32xf32>
    %72 = arith.maximumf %70, %71 : vector<4x32xf32>
    %c36 = arith.constant 36 : index
    %c0_30 = arith.constant 0 : index
    %73 = vector.load %arg10[%c36, %c0_30] : memref<96x32xf32, #tpu.memory_space<vmem>>, vector<4x32xf32>
    tpu.vector_store %arg10[%c36, %c0_30], %72 {strides = array<i32>} : memref<96x32xf32, #tpu.memory_space<vmem>>, vector<4x32xf32>,
    %74 = vector.extract_strided_slice %6 {offsets = [40, 0], sizes = [4, 32], strides = [1, 1]} : vector<96x32xf32> to vector<4x32xf32>
    %75 = arith.mulf %9, %72 : vector<4x32xf32>
    %76 = arith.addf %74, %75 : vector<4x32xf32>
    %cst_31 = arith.constant 0.000000e+00 : f32
    %77 = vector.broadcast %cst_31 : f32 to vector<4x32xf32>
    %78 = arith.maximumf %76, %77 : vector<4x32xf32>
    %c40 = arith.constant 40 : index
    %c0_32 = arith.constant 0 : index
    %79 = vector.load %arg10[%c40, %c0_32] : memref<96x32xf32, #tpu.memory_space<vmem>>, vector<4x32xf32>
    tpu.vector_store %arg10[%c40, %c0_32], %78 {strides = array<i32>} : memref<96x32xf32, #tpu.memory_space<vmem>>, vector<4x32xf32>,
    %80 = vector.extract_strided_slice %6 {offsets = [44, 0], sizes = [4, 32], strides = [1, 1]} : vector<96x32xf32> to vector<4x32xf32>
    %81 = arith.mulf %9, %78 : vector<4x32xf32>
    %82 = arith.addf %80, %81 : vector<4x32xf32>
    %cst_33 = arith.constant 0.000000e+00 : f32
    %83 = vector.broadcast %cst_33 : f32 to vector<4x32xf32>
    %84 = arith.maximumf %82, %83 : vector<4x32xf32>
    %c44 = arith.constant 44 : index
    %c0_34 = arith.constant 0 : index
    %85 = vector.load %arg10[%c44, %c0_34] : memref<96x32xf32, #tpu.memory_space<vmem>>, vector<4x32xf32>
    tpu.vector_store %arg10[%c44, %c0_34], %84 {strides = array<i32>} : memref<96x32xf32, #tpu.memory_space<vmem>>, vector<4x32xf32>,
    %86 = vector.extract_strided_slice %6 {offsets = [48, 0], sizes = [4, 32], strides = [1, 1]} : vector<96x32xf32> to vector<4x32xf32>
    %87 = arith.mulf %9, %84 : vector<4x32xf32>
    %88 = arith.addf %86, %87 : vector<4x32xf32>
    %cst_35 = arith.constant 0.000000e+00 : f32
    %89 = vector.broadcast %cst_35 : f32 to vector<4x32xf32>
    %90 = arith.maximumf %88, %89 : vector<4x32xf32>
    %c48 = arith.constant 48 : index
    %c0_36 = arith.constant 0 : index
    %91 = vector.load %arg10[%c48, %c0_36] : memref<96x32xf32, #tpu.memory_space<vmem>>, vector<4x32xf32>
    tpu.vector_store %arg10[%c48, %c0_36], %90 {strides = array<i32>} : memref<96x32xf32, #tpu.memory_space<vmem>>, vector<4x32xf32>,
    %92 = vector.extract_strided_slice %6 {offsets = [52, 0], sizes = [4, 32], strides = [1, 1]} : vector<96x32xf32> to vector<4x32xf32>
    %93 = arith.mulf %9, %90 : vector<4x32xf32>
    %94 = arith.addf %92, %93 : vector<4x32xf32>
    %cst_37 = arith.constant 0.000000e+00 : f32
    %95 = vector.broadcast %cst_37 : f32 to vector<4x32xf32>
    %96 = arith.maximumf %94, %95 : vector<4x32xf32>
    %c52 = arith.constant 52 : index
    %c0_38 = arith.constant 0 : index
    %97 = vector.load %arg10[%c52, %c0_38] : memref<96x32xf32, #tpu.memory_space<vmem>>, vector<4x32xf32>
    tpu.vector_store %arg10[%c52, %c0_38], %96 {strides = array<i32>} : memref<96x32xf32, #tpu.memory_space<vmem>>, vector<4x32xf32>,
    %98 = vector.extract_strided_slice %6 {offsets = [56, 0], sizes = [4, 32], strides = [1, 1]} : vector<96x32xf32> to vector<4x32xf32>
    %99 = arith.mulf %9, %96 : vector<4x32xf32>
    %100 = arith.addf %98, %99 : vector<4x32xf32>
    %cst_39 = arith.constant 0.000000e+00 : f32
    %101 = vector.broadcast %cst_39 : f32 to vector<4x32xf32>
    %102 = arith.maximumf %100, %101 : vector<4x32xf32>
    %c56 = arith.constant 56 : index
    %c0_40 = arith.constant 0 : index
    %103 = vector.load %arg10[%c56, %c0_40] : memref<96x32xf32, #tpu.memory_space<vmem>>, vector<4x32xf32>
    tpu.vector_store %arg10[%c56, %c0_40], %102 {strides = array<i32>} : memref<96x32xf32, #tpu.memory_space<vmem>>, vector<4x32xf32>,
    %104 = vector.extract_strided_slice %6 {offsets = [60, 0], sizes = [4, 32], strides = [1, 1]} : vector<96x32xf32> to vector<4x32xf32>
    %105 = arith.mulf %9, %102 : vector<4x32xf32>
    %106 = arith.addf %104, %105 : vector<4x32xf32>
    %cst_41 = arith.constant 0.000000e+00 : f32
    %107 = vector.broadcast %cst_41 : f32 to vector<4x32xf32>
    %108 = arith.maximumf %106, %107 : vector<4x32xf32>
    %c60 = arith.constant 60 : index
    %c0_42 = arith.constant 0 : index
    %109 = vector.load %arg10[%c60, %c0_42] : memref<96x32xf32, #tpu.memory_space<vmem>>, vector<4x32xf32>
    tpu.vector_store %arg10[%c60, %c0_42], %108 {strides = array<i32>} : memref<96x32xf32, #tpu.memory_space<vmem>>, vector<4x32xf32>,
    %110 = vector.extract_strided_slice %6 {offsets = [64, 0], sizes = [4, 32], strides = [1, 1]} : vector<96x32xf32> to vector<4x32xf32>
    %111 = arith.mulf %9, %108 : vector<4x32xf32>
    %112 = arith.addf %110, %111 : vector<4x32xf32>
    %cst_43 = arith.constant 0.000000e+00 : f32
    %113 = vector.broadcast %cst_43 : f32 to vector<4x32xf32>
    %114 = arith.maximumf %112, %113 : vector<4x32xf32>
    %c64 = arith.constant 64 : index
    %c0_44 = arith.constant 0 : index
    %115 = vector.load %arg10[%c64, %c0_44] : memref<96x32xf32, #tpu.memory_space<vmem>>, vector<4x32xf32>
    tpu.vector_store %arg10[%c64, %c0_44], %114 {strides = array<i32>} : memref<96x32xf32, #tpu.memory_space<vmem>>, vector<4x32xf32>,
    %116 = vector.extract_strided_slice %6 {offsets = [68, 0], sizes = [4, 32], strides = [1, 1]} : vector<96x32xf32> to vector<4x32xf32>
    %117 = arith.mulf %9, %114 : vector<4x32xf32>
    %118 = arith.addf %116, %117 : vector<4x32xf32>
    %cst_45 = arith.constant 0.000000e+00 : f32
    %119 = vector.broadcast %cst_45 : f32 to vector<4x32xf32>
    %120 = arith.maximumf %118, %119 : vector<4x32xf32>
    %c68 = arith.constant 68 : index
    %c0_46 = arith.constant 0 : index
    %121 = vector.load %arg10[%c68, %c0_46] : memref<96x32xf32, #tpu.memory_space<vmem>>, vector<4x32xf32>
    tpu.vector_store %arg10[%c68, %c0_46], %120 {strides = array<i32>} : memref<96x32xf32, #tpu.memory_space<vmem>>, vector<4x32xf32>,
    %122 = vector.extract_strided_slice %6 {offsets = [72, 0], sizes = [4, 32], strides = [1, 1]} : vector<96x32xf32> to vector<4x32xf32>
    %123 = arith.mulf %9, %120 : vector<4x32xf32>
    %124 = arith.addf %122, %123 : vector<4x32xf32>
    %cst_47 = arith.constant 0.000000e+00 : f32
    %125 = vector.broadcast %cst_47 : f32 to vector<4x32xf32>
    %126 = arith.maximumf %124, %125 : vector<4x32xf32>
    %c72 = arith.constant 72 : index
    %c0_48 = arith.constant 0 : index
    %127 = vector.load %arg10[%c72, %c0_48] : memref<96x32xf32, #tpu.memory_space<vmem>>, vector<4x32xf32>
    tpu.vector_store %arg10[%c72, %c0_48], %126 {strides = array<i32>} : memref<96x32xf32, #tpu.memory_space<vmem>>, vector<4x32xf32>,
    %128 = vector.extract_strided_slice %6 {offsets = [76, 0], sizes = [4, 32], strides = [1, 1]} : vector<96x32xf32> to vector<4x32xf32>
    %129 = arith.mulf %9, %126 : vector<4x32xf32>
    %130 = arith.addf %128, %129 : vector<4x32xf32>
    %cst_49 = arith.constant 0.000000e+00 : f32
    %131 = vector.broadcast %cst_49 : f32 to vector<4x32xf32>
    %132 = arith.maximumf %130, %131 : vector<4x32xf32>
    %c76 = arith.constant 76 : index
    %c0_50 = arith.constant 0 : index
    %133 = vector.load %arg10[%c76, %c0_50] : memref<96x32xf32, #tpu.memory_space<vmem>>, vector<4x32xf32>
    tpu.vector_store %arg10[%c76, %c0_50], %132 {strides = array<i32>} : memref<96x32xf32, #tpu.memory_space<vmem>>, vector<4x32xf32>,
    %134 = vector.extract_strided_slice %6 {offsets = [80, 0], sizes = [4, 32], strides = [1, 1]} : vector<96x32xf32> to vector<4x32xf32>
    %135 = arith.mulf %9, %132 : vector<4x32xf32>
    %136 = arith.addf %134, %135 : vector<4x32xf32>
    %cst_51 = arith.constant 0.000000e+00 : f32
    %137 = vector.broadcast %cst_51 : f32 to vector<4x32xf32>
    %138 = arith.maximumf %136, %137 : vector<4x32xf32>
    %c80 = arith.constant 80 : index
    %c0_52 = arith.constant 0 : index
    %139 = vector.load %arg10[%c80, %c0_52] : memref<96x32xf32, #tpu.memory_space<vmem>>, vector<4x32xf32>
    tpu.vector_store %arg10[%c80, %c0_52], %138 {strides = array<i32>} : memref<96x32xf32, #tpu.memory_space<vmem>>, vector<4x32xf32>,
    %140 = vector.extract_strided_slice %6 {offsets = [84, 0], sizes = [4, 32], strides = [1, 1]} : vector<96x32xf32> to vector<4x32xf32>
    %141 = arith.mulf %9, %138 : vector<4x32xf32>
    %142 = arith.addf %140, %141 : vector<4x32xf32>
    %cst_53 = arith.constant 0.000000e+00 : f32
    %143 = vector.broadcast %cst_53 : f32 to vector<4x32xf32>
    %144 = arith.maximumf %142, %143 : vector<4x32xf32>
    %c84 = arith.constant 84 : index
    %c0_54 = arith.constant 0 : index
    %145 = vector.load %arg10[%c84, %c0_54] : memref<96x32xf32, #tpu.memory_space<vmem>>, vector<4x32xf32>
    tpu.vector_store %arg10[%c84, %c0_54], %144 {strides = array<i32>} : memref<96x32xf32, #tpu.memory_space<vmem>>, vector<4x32xf32>,
    %146 = vector.extract_strided_slice %6 {offsets = [88, 0], sizes = [4, 32], strides = [1, 1]} : vector<96x32xf32> to vector<4x32xf32>
    %147 = arith.mulf %9, %144 : vector<4x32xf32>
    %148 = arith.addf %146, %147 : vector<4x32xf32>
    %cst_55 = arith.constant 0.000000e+00 : f32
    %149 = vector.broadcast %cst_55 : f32 to vector<4x32xf32>
    %150 = arith.maximumf %148, %149 : vector<4x32xf32>
    %c88 = arith.constant 88 : index
    %c0_56 = arith.constant 0 : index
    %151 = vector.load %arg10[%c88, %c0_56] : memref<96x32xf32, #tpu.memory_space<vmem>>, vector<4x32xf32>
    tpu.vector_store %arg10[%c88, %c0_56], %150 {strides = array<i32>} : memref<96x32xf32, #tpu.memory_space<vmem>>, vector<4x32xf32>,
    %152 = vector.extract_strided_slice %6 {offsets = [92, 0], sizes = [4, 32], strides = [1, 1]} : vector<96x32xf32> to vector<4x32xf32>
    %153 = arith.mulf %9, %150 : vector<4x32xf32>
    %154 = arith.addf %152, %153 : vector<4x32xf32>
    %cst_57 = arith.constant 0.000000e+00 : f32
    %155 = vector.broadcast %cst_57 : f32 to vector<4x32xf32>
    %156 = arith.maximumf %154, %155 : vector<4x32xf32>
    %c92 = arith.constant 92 : index
    %c0_58 = arith.constant 0 : index
    %157 = vector.load %arg10[%c92, %c0_58] : memref<96x32xf32, #tpu.memory_space<vmem>>, vector<4x32xf32>
    tpu.vector_store %arg10[%c92, %c0_58], %156 {strides = array<i32>} : memref<96x32xf32, #tpu.memory_space<vmem>>, vector<4x32xf32>,
    %c0_59 = arith.constant 0 : index
    %c0_60 = arith.constant 0 : index
    %158 = vector.load %arg10[%c0_59, %c0_60] : memref<96x32xf32, #tpu.memory_space<vmem>>, vector<96x32xf32>
    %c0_61 = arith.constant 0 : index
    %c0_62 = arith.constant 0 : index
    %159 = vector.load %arg4[%c0_61, %c0_62] : memref<32x32xf32, #tpu.memory_space<vmem>>, vector<32x32xf32>
    %cst_63 = arith.constant dense<0.000000e+00> : vector<96x32xf32>
    %160 = tpu.matmul %158, %159, %cst_63 {dimension_numbers = #tpu.dot_dimension_numbers<[1], [0], [0], [1], [0, 0, 1, 1], [], []>} : vector<96x32xf32>, vector<32x32xf32>, vector<96x32xf32> -> vector<96x32xf32>
    %c0_64 = arith.constant 0 : index
    %c0_65 = arith.constant 0 : index
    %161 = vector.load %arg6[%c0_64, %c0_65] : memref<1x32xf32, #tpu.memory_space<vmem>>, vector<1x32xf32>
    %162 = vector.shape_cast %161 : vector<1x32xf32> to vector<1x32xf32>
    %163 = vector.broadcast %162 : vector<1x32xf32> to vector<96x32xf32>
    %164 = arith.addf %160, %163 : vector<96x32xf32>
    %cst_66 = arith.constant 0.000000e+00 : f32
    %165 = vector.broadcast %cst_66 : f32 to vector<4x32xf32>
    %166 = vector.extract_strided_slice %164 {offsets = [0, 0], sizes = [4, 32], strides = [1, 1]} : vector<96x32xf32> to vector<4x32xf32>
    %167 = arith.mulf %12, %165 : vector<4x32xf32>
    %168 = arith.addf %166, %167 : vector<4x32xf32>
    %cst_67 = arith.constant 0.000000e+00 : f32
    %169 = vector.broadcast %cst_67 : f32 to vector<4x32xf32>
    %170 = arith.maximumf %168, %169 : vector<4x32xf32>
    %171 = vector.extract_strided_slice %164 {offsets = [4, 0], sizes = [4, 32], strides = [1, 1]} : vector<96x32xf32> to vector<4x32xf32>
    %172 = arith.mulf %12, %170 : vector<4x32xf32>
    %173 = arith.addf %171, %172 : vector<4x32xf32>
    %cst_68 = arith.constant 0.000000e+00 : f32
    %174 = vector.broadcast %cst_68 : f32 to vector<4x32xf32>
    %175 = arith.maximumf %173, %174 : vector<4x32xf32>
    %176 = vector.extract_strided_slice %164 {offsets = [8, 0], sizes = [4, 32], strides = [1, 1]} : vector<96x32xf32> to vector<4x32xf32>
    %177 = arith.mulf %12, %175 : vector<4x32xf32>
    %178 = arith.addf %176, %177 : vector<4x32xf32>
    %cst_69 = arith.constant 0.000000e+00 : f32
    %179 = vector.broadcast %cst_69 : f32 to vector<4x32xf32>
    %180 = arith.maximumf %178, %179 : vector<4x32xf32>
    %181 = vector.extract_strided_slice %164 {offsets = [12, 0], sizes = [4, 32], strides = [1, 1]} : vector<96x32xf32> to vector<4x32xf32>
    %182 = arith.mulf %12, %180 : vector<4x32xf32>
    %183 = arith.addf %181, %182 : vector<4x32xf32>
    %cst_70 = arith.constant 0.000000e+00 : f32
    %184 = vector.broadcast %cst_70 : f32 to vector<4x32xf32>
    %185 = arith.maximumf %183, %184 : vector<4x32xf32>
    %186 = vector.extract_strided_slice %164 {offsets = [16, 0], sizes = [4, 32], strides = [1, 1]} : vector<96x32xf32> to vector<4x32xf32>
    %187 = arith.mulf %12, %185 : vector<4x32xf32>
    %188 = arith.addf %186, %187 : vector<4x32xf32>
    %cst_71 = arith.constant 0.000000e+00 : f32
    %189 = vector.broadcast %cst_71 : f32 to vector<4x32xf32>
    %190 = arith.maximumf %188, %189 : vector<4x32xf32>
    %191 = vector.extract_strided_slice %164 {offsets = [20, 0], sizes = [4, 32], strides = [1, 1]} : vector<96x32xf32> to vector<4x32xf32>
    %192 = arith.mulf %12, %190 : vector<4x32xf32>
    %193 = arith.addf %191, %192 : vector<4x32xf32>
    %cst_72 = arith.constant 0.000000e+00 : f32
    %194 = vector.broadcast %cst_72 : f32 to vector<4x32xf32>
    %195 = arith.maximumf %193, %194 : vector<4x32xf32>
    %196 = vector.extract_strided_slice %164 {offsets = [24, 0], sizes = [4, 32], strides = [1, 1]} : vector<96x32xf32> to vector<4x32xf32>
    %197 = arith.mulf %12, %195 : vector<4x32xf32>
    %198 = arith.addf %196, %197 : vector<4x32xf32>
    %cst_73 = arith.constant 0.000000e+00 : f32
    %199 = vector.broadcast %cst_73 : f32 to vector<4x32xf32>
    %200 = arith.maximumf %198, %199 : vector<4x32xf32>
    %201 = vector.extract_strided_slice %164 {offsets = [28, 0], sizes = [4, 32], strides = [1, 1]} : vector<96x32xf32> to vector<4x32xf32>
    %202 = arith.mulf %12, %200 : vector<4x32xf32>
    %203 = arith.addf %201, %202 : vector<4x32xf32>
    %cst_74 = arith.constant 0.000000e+00 : f32
    %204 = vector.broadcast %cst_74 : f32 to vector<4x32xf32>
    %205 = arith.maximumf %203, %204 : vector<4x32xf32>
    %206 = vector.extract_strided_slice %164 {offsets = [32, 0], sizes = [4, 32], strides = [1, 1]} : vector<96x32xf32> to vector<4x32xf32>
    %207 = arith.mulf %12, %205 : vector<4x32xf32>
    %208 = arith.addf %206, %207 : vector<4x32xf32>
    %cst_75 = arith.constant 0.000000e+00 : f32
    %209 = vector.broadcast %cst_75 : f32 to vector<4x32xf32>
    %210 = arith.maximumf %208, %209 : vector<4x32xf32>
    %211 = vector.extract_strided_slice %164 {offsets = [36, 0], sizes = [4, 32], strides = [1, 1]} : vector<96x32xf32> to vector<4x32xf32>
    %212 = arith.mulf %12, %210 : vector<4x32xf32>
    %213 = arith.addf %211, %212 : vector<4x32xf32>
    %cst_76 = arith.constant 0.000000e+00 : f32
    %214 = vector.broadcast %cst_76 : f32 to vector<4x32xf32>
    %215 = arith.maximumf %213, %214 : vector<4x32xf32>
    %216 = vector.extract_strided_slice %164 {offsets = [40, 0], sizes = [4, 32], strides = [1, 1]} : vector<96x32xf32> to vector<4x32xf32>
    %217 = arith.mulf %12, %215 : vector<4x32xf32>
    %218 = arith.addf %216, %217 : vector<4x32xf32>
    %cst_77 = arith.constant 0.000000e+00 : f32
    %219 = vector.broadcast %cst_77 : f32 to vector<4x32xf32>
    %220 = arith.maximumf %218, %219 : vector<4x32xf32>
    %221 = vector.extract_strided_slice %164 {offsets = [44, 0], sizes = [4, 32], strides = [1, 1]} : vector<96x32xf32> to vector<4x32xf32>
    %222 = arith.mulf %12, %220 : vector<4x32xf32>
    %223 = arith.addf %221, %222 : vector<4x32xf32>
    %cst_78 = arith.constant 0.000000e+00 : f32
    %224 = vector.broadcast %cst_78 : f32 to vector<4x32xf32>
    %225 = arith.maximumf %223, %224 : vector<4x32xf32>
    %226 = vector.extract_strided_slice %164 {offsets = [48, 0], sizes = [4, 32], strides = [1, 1]} : vector<96x32xf32> to vector<4x32xf32>
    %227 = arith.mulf %12, %225 : vector<4x32xf32>
    %228 = arith.addf %226, %227 : vector<4x32xf32>
    %cst_79 = arith.constant 0.000000e+00 : f32
    %229 = vector.broadcast %cst_79 : f32 to vector<4x32xf32>
    %230 = arith.maximumf %228, %229 : vector<4x32xf32>
    %231 = vector.extract_strided_slice %164 {offsets = [52, 0], sizes = [4, 32], strides = [1, 1]} : vector<96x32xf32> to vector<4x32xf32>
    %232 = arith.mulf %12, %230 : vector<4x32xf32>
    %233 = arith.addf %231, %232 : vector<4x32xf32>
    %cst_80 = arith.constant 0.000000e+00 : f32
    %234 = vector.broadcast %cst_80 : f32 to vector<4x32xf32>
    %235 = arith.maximumf %233, %234 : vector<4x32xf32>
    %236 = vector.extract_strided_slice %164 {offsets = [56, 0], sizes = [4, 32], strides = [1, 1]} : vector<96x32xf32> to vector<4x32xf32>
    %237 = arith.mulf %12, %235 : vector<4x32xf32>
    %238 = arith.addf %236, %237 : vector<4x32xf32>
    %cst_81 = arith.constant 0.000000e+00 : f32
    %239 = vector.broadcast %cst_81 : f32 to vector<4x32xf32>
    %240 = arith.maximumf %238, %239 : vector<4x32xf32>
    %241 = vector.extract_strided_slice %164 {offsets = [60, 0], sizes = [4, 32], strides = [1, 1]} : vector<96x32xf32> to vector<4x32xf32>
    %242 = arith.mulf %12, %240 : vector<4x32xf32>
    %243 = arith.addf %241, %242 : vector<4x32xf32>
    %cst_82 = arith.constant 0.000000e+00 : f32
    %244 = vector.broadcast %cst_82 : f32 to vector<4x32xf32>
    %245 = arith.maximumf %243, %244 : vector<4x32xf32>
    %246 = vector.extract_strided_slice %164 {offsets = [64, 0], sizes = [4, 32], strides = [1, 1]} : vector<96x32xf32> to vector<4x32xf32>
    %247 = arith.mulf %12, %245 : vector<4x32xf32>
    %248 = arith.addf %246, %247 : vector<4x32xf32>
    %cst_83 = arith.constant 0.000000e+00 : f32
    %249 = vector.broadcast %cst_83 : f32 to vector<4x32xf32>
    %250 = arith.maximumf %248, %249 : vector<4x32xf32>
    %251 = vector.extract_strided_slice %164 {offsets = [68, 0], sizes = [4, 32], strides = [1, 1]} : vector<96x32xf32> to vector<4x32xf32>
    %252 = arith.mulf %12, %250 : vector<4x32xf32>
    %253 = arith.addf %251, %252 : vector<4x32xf32>
    %cst_84 = arith.constant 0.000000e+00 : f32
    %254 = vector.broadcast %cst_84 : f32 to vector<4x32xf32>
    %255 = arith.maximumf %253, %254 : vector<4x32xf32>
    %256 = vector.extract_strided_slice %164 {offsets = [72, 0], sizes = [4, 32], strides = [1, 1]} : vector<96x32xf32> to vector<4x32xf32>
    %257 = arith.mulf %12, %255 : vector<4x32xf32>
    %258 = arith.addf %256, %257 : vector<4x32xf32>
    %cst_85 = arith.constant 0.000000e+00 : f32
    %259 = vector.broadcast %cst_85 : f32 to vector<4x32xf32>
    %260 = arith.maximumf %258, %259 : vector<4x32xf32>
    %261 = vector.extract_strided_slice %164 {offsets = [76, 0], sizes = [4, 32], strides = [1, 1]} : vector<96x32xf32> to vector<4x32xf32>
    %262 = arith.mulf %12, %260 : vector<4x32xf32>
    %263 = arith.addf %261, %262 : vector<4x32xf32>
    %cst_86 = arith.constant 0.000000e+00 : f32
    %264 = vector.broadcast %cst_86 : f32 to vector<4x32xf32>
    %265 = arith.maximumf %263, %264 : vector<4x32xf32>
    %266 = vector.extract_strided_slice %164 {offsets = [80, 0], sizes = [4, 32], strides = [1, 1]} : vector<96x32xf32> to vector<4x32xf32>
    %267 = arith.mulf %12, %265 : vector<4x32xf32>
    %268 = arith.addf %266, %267 : vector<4x32xf32>
    %cst_87 = arith.constant 0.000000e+00 : f32
    %269 = vector.broadcast %cst_87 : f32 to vector<4x32xf32>
    %270 = arith.maximumf %268, %269 : vector<4x32xf32>
    %271 = vector.extract_strided_slice %164 {offsets = [84, 0], sizes = [4, 32], strides = [1, 1]} : vector<96x32xf32> to vector<4x32xf32>
    %272 = arith.mulf %12, %270 : vector<4x32xf32>
    %273 = arith.addf %271, %272 : vector<4x32xf32>
    %cst_88 = arith.constant 0.000000e+00 : f32
    %274 = vector.broadcast %cst_88 : f32 to vector<4x32xf32>
    %275 = arith.maximumf %273, %274 : vector<4x32xf32>
    %276 = vector.extract_strided_slice %164 {offsets = [88, 0], sizes = [4, 32], strides = [1, 1]} : vector<96x32xf32> to vector<4x32xf32>
    %277 = arith.mulf %12, %275 : vector<4x32xf32>
    %278 = arith.addf %276, %277 : vector<4x32xf32>
    %cst_89 = arith.constant 0.000000e+00 : f32
    %279 = vector.broadcast %cst_89 : f32 to vector<4x32xf32>
    %280 = arith.maximumf %278, %279 : vector<4x32xf32>
    %281 = vector.extract_strided_slice %164 {offsets = [92, 0], sizes = [4, 32], strides = [1, 1]} : vector<96x32xf32> to vector<4x32xf32>
    %282 = arith.mulf %12, %280 : vector<4x32xf32>
    %283 = arith.addf %281, %282 : vector<4x32xf32>
    %cst_90 = arith.constant 0.000000e+00 : f32
    %284 = vector.broadcast %cst_90 : f32 to vector<4x32xf32>
    %285 = arith.maximumf %283, %284 : vector<4x32xf32>
    %c0_91 = arith.constant 0 : index
    %c0_92 = arith.constant 0 : index
    %286 = vector.load %arg7[%c0_91, %c0_92] : memref<32x10xf32, #tpu.memory_space<vmem>>, vector<32x10xf32>
    %cst_93 = arith.constant dense<0.000000e+00> : vector<4x10xf32>
    %287 = tpu.matmul %285, %286, %cst_93 {dimension_numbers = #tpu.dot_dimension_numbers<[1], [0], [0], [1], [0, 0, 1, 1], [], []>} : vector<4x32xf32>, vector<32x10xf32>, vector<4x10xf32> -> vector<4x10xf32>
    %c0_94 = arith.constant 0 : index
    %c0_95 = arith.constant 0 : index
    %288 = vector.load %arg8[%c0_94, %c0_95] : memref<1x10xf32, #tpu.memory_space<vmem>>, vector<1x10xf32>
    %289 = vector.broadcast %288 : vector<1x10xf32> to vector<4x10xf32>
    %290 = arith.addf %287, %289 : vector<4x10xf32>
    %c0_96 = arith.constant 0 : index
    %c0_97 = arith.constant 0 : index
    %291 = vector.load %arg9[%c0_96, %c0_97] : memref<4x10xf32, #tpu.memory_space<vmem>>, vector<4x10xf32>
    tpu.vector_store %arg9[%c0_96, %c0_97], %290 {strides = array<i32>} : memref<4x10xf32, #tpu.memory_space<vmem>>, vector<4x10xf32>,
    return
  }
}

</mosaic_0001>

<llo_original>
// kernel: tpu_custom_call.1
$region0: #{tpu_custom_call.1}
  #allocation0 [shape = 'u32[]', space=smem, size = 0x4, offset = 0x4, fixed_abs, tag = 'smem constant byte address 0x4 - core index']
  #allocation1 [shape = 'u32[144,128]{1,0:T(1,128)}', space=vmem, size = 0x12000, scoped, tag = 'internal scratch']
  #allocation2 [shape = 'f32[96,32]{1,0:T(8,128)}', space=vmem, size = 0xc000, scoped, tag = 'scratch operand']
  %s0 = inlined_call_operand.vmem [shape: f32[96,16], index: 0, kind: input, shape index: {}]
  %s1 = inlined_call_operand.vmem [shape: f32[16,32], index: 1, kind: input, shape index: {}]
  %s2 = inlined_call_operand.vmem [shape: f32[1,32], index: 2, kind: input, shape index: {}]
  %s3 = inlined_call_operand.vmem [shape: f32[1,32], index: 3, kind: input, shape index: {}]
  %s4 = inlined_call_operand.vmem [shape: f32[32,32], index: 4, kind: input, shape index: {}]
  %s5 = inlined_call_operand.vmem [shape: f32[1,32], index: 5, kind: input, shape index: {}]
  %s6 = inlined_call_operand.vmem [shape: f32[1,32], index: 6, kind: input, shape index: {}]
  %s7 = inlined_call_operand.vmem [shape: f32[32,10], index: 7, kind: input, shape index: {}]
  %s8 = inlined_call_operand.vmem [shape: f32[1,10], index: 8, kind: input, shape index: {}]
  %s9 = inlined_call_operand.hbm [shape: f32[4,10], index: 9, kind: output, shape index: {}]
  %s10 = sld [smem:[#allocation0]]
  $region46: #{tpu_custom_call.1} parent=0
    _
  %s12 = ssub.s32 1, %s10
  %s13 = scalar_select 0, %s12, %s10
  $region1: #{tpu_custom_call.1} parent=0
    #allocation3 [shape = 'u8[2048]{0}', space=vmem, size = 0x800, scoped, tag = 'output window, operand 0, single buffered']
    #allocation4 [shape = 's32[1]{0}', space=sflag, size = 0x4, scoped, tag = 'scoped memory for tpu_custom_call.1']
    %14 = vsyncpa [#allocation4], 0
    // Predicated region
    $region2: #{tpu_custom_call.1} parent=1 // pred_check
      _
    $region3: #{tpu_custom_call.1} parent=1 // pred_check_branch
      %16 = sbr.rel (0) target = $region5
    $region4: #{tpu_custom_call.1} parent=1 // pred_region
      _
    $region5: #{tpu_custom_call.1} parent=1 // pred_fallthru
      _
    // Predicated region
    $region6: #{tpu_custom_call.1} parent=1 // pred_check
      _
    $region7: #{tpu_custom_call.1} parent=1 // pred_check_branch
      %18 = sbr.rel (0) target = $region9
    $region8: #{tpu_custom_call.1} parent=1 // pred_region
      _
    $region9: #{tpu_custom_call.1} parent=1 // pred_fallthru
      _
    // Predicated region
    $region10: #{tpu_custom_call.1} parent=1 // pred_check
      _
    $region11: #{tpu_custom_call.1} parent=1 // pred_check_branch
      %20 = sbr.rel (0) target = $region13
    $region12: #{tpu_custom_call.1} parent=1 // pred_region
      _
    $region13: #{tpu_custom_call.1} parent=1 // pred_fallthru
      _
    // Predicated region
    $region14: #{tpu_custom_call.1} parent=1 // pred_check
      _
    $region15: #{tpu_custom_call.1} parent=1 // pred_check_branch
      %22 = sbr.rel (0) target = $region17
    $region16: #{tpu_custom_call.1} parent=1 // pred_region
      _
    $region17: #{tpu_custom_call.1} parent=1 // pred_fallthru
      _
    // Predicated region
    $region18: #{tpu_custom_call.1} parent=1 // pred_check
      _
    $region19: #{tpu_custom_call.1} parent=1 // pred_check_branch
      %24 = sbr.rel (0) target = $region21
    $region20: #{tpu_custom_call.1} parent=1 // pred_region
      _
    $region21: #{tpu_custom_call.1} parent=1 // pred_fallthru
      _
    // Predicated region
    $region22: #{tpu_custom_call.1} parent=1 // pred_check
      _
    $region23: #{tpu_custom_call.1} parent=1 // pred_check_branch
      %26 = sbr.rel (0) target = $region25
    $region24: #{tpu_custom_call.1} parent=1 // pred_region
      _
    $region25: #{tpu_custom_call.1} parent=1 // pred_fallthru
      _
    // Predicated region
    $region26: #{tpu_custom_call.1} parent=1 // pred_check
      _
    $region27: #{tpu_custom_call.1} parent=1 // pred_check_branch
      %28 = sbr.rel (0) target = $region29
    $region28: #{tpu_custom_call.1} parent=1 // pred_region
      _
    $region29: #{tpu_custom_call.1} parent=1 // pred_fallthru
      _
    // Predicated region
    $region30: #{tpu_custom_call.1} parent=1 // pred_check
      _
    $region31: #{tpu_custom_call.1} parent=1 // pred_check_branch
      %30 = sbr.rel (0) target = $region33
    $region32: #{tpu_custom_call.1} parent=1 // pred_region
      _
    $region33: #{tpu_custom_call.1} parent=1 // pred_fallthru
      _
    // Predicated region
    $region34: #{tpu_custom_call.1} parent=1 // pred_check
      _
    $region35: #{tpu_custom_call.1} parent=1 // pred_check_branch
      %32 = sbr.rel (0) target = $region37
    $region36: #{tpu_custom_call.1} parent=1 // pred_region
      _
    $region37: #{tpu_custom_call.1} parent=1 // pred_fallthru
      _
    %v33 = vld [vmem:[%s0] sm:$0xff]
    %v34 = vld [vmem:[%s0 + $0x8] sm:$0xff]
    %v35 = vld [vmem:[%s0 + $0x10] sm:$0xff]
    %v36 = vld [vmem:[%s0 + $0x18] sm:$0xff]
    %v37 = vld [vmem:[%s0 + $0x20] sm:$0xff]
    %v38 = vld [vmem:[%s0 + $0x28] sm:$0xff]
    %v39 = vld [vmem:[%s0 + $0x30] sm:$0xff]
    %v40 = vld [vmem:[%s0 + $0x38] sm:$0xff]
    %v41 = vld [vmem:[%s0 + $0x40] sm:$0xff]
    %v42 = vld [vmem:[%s0 + $0x48] sm:$0xff]
    %v43 = vld [vmem:[%s0 + $0x50] sm:$0xff]
    %v44 = vld [vmem:[%s0 + $0x58] sm:$0xff]
    %v45 = vld [vmem:[%s1] sm:$0xff]
    %v46 = vld [vmem:[%s1 + $0x8] sm:$0xff]
    %v47 = vld [vmem:[%s3] sm:$0x1]
    %v49 = vlaneseq
    %v50 = vshrl.u32 %v49, 7
    %v51 = vsub.s32 0, %v50
    %v52 = vrot.slane %v47, %v51
    %vm54 = vcmask 130048
    %v56 = vsel %vm54, %v33, 0
    %v59 = vsel %vm54, %v34, 0
    %v62 = vsel %vm54, %v35, 0
    %v65 = vsel %vm54, %v36, 0
    %v68 = vsel %vm54, %v37, 0
    %v71 = vsel %vm54, %v38, 0
    %v74 = vsel %vm54, %v39, 0
    %v77 = vsel %vm54, %v40, 0
    %v80 = vsel %vm54, %v41, 0
    %v83 = vsel %vm54, %v42, 0
    %v86 = vsel %vm54, %v43, 0
    %v89 = vsel %vm54, %v44, 0
    %91 = vmatprep.subr.mxu0 0.0
    %92 = vmatpush1.msra.mxu0 %v45
    %93 = vmatprep.subr.mxu0 0.0
    %94 = vmatpush1.msra.mxu0 %v46
    %95 = vmatprep.subr.mxu0 0.0
    %96 = vmatpush1.msra.mxu0 0.0
    %97 = vmatprep.subr.mxu0 0.0
    %98 = vmatpush1.msra.mxu0 0.0
    %99 = vmatprep.subr.mxu0 0.0
    %100 = vmatpush1.msra.mxu0 0.0
    %101 = vmatprep.subr.mxu0 0.0
    %102 = vmatpush1.msra.mxu0 0.0
    %103 = vmatprep.subr.mxu0 0.0
    %104 = vmatpush1.msra.mxu0 0.0
    %105 = vmatprep.subr.mxu0 0.0
    %106 = vmatpush1.msra.mxu0 0.0
    %107 = vmatprep.subr.mxu0 0.0
    %108 = vmatpush1.msra.mxu0 0.0
    %109 = vmatprep.subr.mxu0 0.0
    %110 = vmatpush1.msra.mxu0 0.0
    %111 = vmatprep.subr.mxu0 0.0
    %112 = vmatpush1.msra.mxu0 0.0
    %113 = vmatprep.subr.mxu0 0.0
    %114 = vmatpush1.msra.mxu0 0.0
    %115 = vmatprep.subr.mxu0 0.0
    %116 = vmatpush1.msra.mxu0 0.0
    %117 = vmatprep.subr.mxu0 0.0
    %118 = vmatpush1.msra.mxu0 0.0
    %119 = vmatprep.subr.mxu0 0.0
    %120 = vmatpush1.msra.mxu0 0.0
    %121 = vmatprep.subr.mxu0 0.0
    %122 = vmatpush1.msra.mxu0 0.0
    %123 = vmatprep.subr.mxu0 0.0
    %124 = vmatpush1.msra.mxu0 0.0
    %125 = vmatprep.subr.mxu0 0.0
    %126 = vmatpush1.msra.mxu0 0.0
    %127 = vmatprep.subr.mxu0 0.0
    %128 = vmatpush1.msra.mxu0 0.0
    %129 = vmatprep.subr.mxu0 0.0
    %130 = vmatpush1.msra.mxu0 0.0
    %131 = vmatprep.subr.mxu0 0.0
    %132 = vmatpush1.msra.mxu0 0.0
    %133 = vmatprep.subr.mxu0 0.0
    %134 = vmatpush1.msra.mxu0 0.0
    %135 = vmatprep.subr.mxu0 0.0
    %136 = vmatpush1.msra.mxu0 0.0
    %137 = vmatprep.subr.mxu0 0.0
    %138 = vmatpush1.msra.mxu0 0.0
    %139 = vmatprep.subr.mxu0 0.0
    %140 = vmatpush1.msra.mxu0 0.0
    %141 = vmatprep.subr.mxu0 0.0
    %142 = vmatpush1.msra.mxu0 0.0
    %143 = vmatprep.subr.mxu0 0.0
    %144 = vmatpush1.msra.mxu0 0.0
    %145 = vmatprep.subr.mxu0 0.0
    %146 = vmatpush1.msra.mxu0 0.0
    %147 = vmatprep.subr.mxu0 0.0
    %148 = vmatpush1.msra.mxu0 0.0
    %149 = vmatprep.subr.mxu0 0.0
    %150 = vmatpush1.msra.mxu0 0.0
    %151 = vmatprep.subr.mxu0 0.0
    %152 = vmatpush1.msra.mxu0 0.0
    %153 = vmatprep.subr.mxu0 0.0
    %154 = vmatpush1.msra.mxu0 0.0
    %155 = vmatprep.mubr.f32.mxu0 0.0
    %156 = vmatmul.mubr.f32.gmra.mrb[0].mxu0 %v56
    %v157 = vpop.f32.mrb[0].mxu0
    %v158 = vadd.f32 %v52, %v157
    %v159 = vpop.f32.mrb[0].mxu0
    %160 = vmatprep.mubr.f32.mxu0 0.0
    %161 = vmatmul.mubr.f32.gmra.mrb[0].mxu0 %v59
    %v162 = vpop.f32.mrb[0].mxu0
    %v163 = vadd.f32 %v52, %v162
    %v164 = vpop.f32.mrb[0].mxu0
    %165 = vmatprep.mubr.f32.mxu0 0.0
    %166 = vmatmul.mubr.f32.gmra.mrb[0].mxu0 %v62
    %v167 = vpop.f32.mrb[0].mxu0
    %v168 = vadd.f32 %v52, %v167
    %v169 = vpop.f32.mrb[0].mxu0
    %170 = vmatprep.mubr.f32.mxu0 0.0
    %171 = vmatmul.mubr.f32.gmra.mrb[0].mxu0 %v65
    %v172 = vpop.f32.mrb[0].mxu0
    %v173 = vadd.f32 %v52, %v172
    %v174 = vpop.f32.mrb[0].mxu0
    %175 = vmatprep.mubr.f32.mxu0 0.0
    %176 = vmatmul.mubr.f32.gmra.mrb[0].mxu0 %v68
    %v177 = vpop.f32.mrb[0].mxu0
    %v178 = vadd.f32 %v52, %v177
    %v179 = vpop.f32.mrb[0].mxu0
    %180 = vmatprep.mubr.f32.mxu0 0.0
    %181 = vmatmul.mubr.f32.gmra.mrb[0].mxu0 %v71
    %v182 = vpop.f32.mrb[0].mxu0
    %v183 = vadd.f32 %v52, %v182
    %v184 = vpop.f32.mrb[0].mxu0
    %185 = vmatprep.mubr.f32.mxu0 0.0
    %186 = vmatmul.mubr.f32.gmra.mrb[0].mxu0 %v74
    %v187 = vpop.f32.mrb[0].mxu0
    %v188 = vadd.f32 %v52, %v187
    %v189 = vpop.f32.mrb[0].mxu0
    %190 = vmatprep.mubr.f32.mxu0 0.0
    %191 = vmatmul.mubr.f32.gmra.mrb[0].mxu0 %v77
    %v192 = vpop.f32.mrb[0].mxu0
    %v193 = vadd.f32 %v52, %v192
    %v194 = vpop.f32.mrb[0].mxu0
    %195 = vmatprep.mubr.f32.mxu0 0.0
    %196 = vmatmul.mubr.f32.gmra.mrb[0].mxu0 %v80
    %v197 = vpop.f32.mrb[0].mxu0
    %v198 = vadd.f32 %v52, %v197
    %v199 = vpop.f32.mrb[0].mxu0
    %200 = vmatprep.mubr.f32.mxu0 0.0
    %201 = vmatmul.mubr.f32.gmra.mrb[0].mxu0 %v83
    %v202 = vpop.f32.mrb[0].mxu0
    %v203 = vadd.f32 %v52, %v202
    %v204 = vpop.f32.mrb[0].mxu0
    %205 = vmatprep.mubr.f32.mxu0 0.0
    %206 = vmatmul.mubr.f32.gmra.mrb[0].mxu0 %v86
    %v207 = vpop.f32.mrb[0].mxu0
    %v208 = vadd.f32 %v52, %v207
    %v209 = vpop.f32.mrb[0].mxu0
    %210 = vmatprep.mubr.f32.mxu0 0.0
    %211 = vmatmul.mubr.f32.gmra.mrb[0].mxu0 %v89
    %v212 = vpop.f32.mrb[0].mxu0
    %v213 = vadd.f32 %v52, %v212
    %v214 = vpop.f32.mrb[0].mxu0
    %215 = vdwg.mxu0
    %v216 = vld [vmem:[%s2] sm:$0x1]
    %v218 = vlaneseq
    %v219 = vshrl.u32 %v218, 7
    %v220 = vsub.s32 0, %v219
    %v221 = vrot.slane %v216, %v220
    %v223 = vld [vmem:[%s5] sm:$0x1]
    %v225 = vlaneseq
    %v226 = vshrl.u32 %v225, 7
    %v227 = vsub.s32 0, %v226
    %v228 = vrot.slane %v223, %v227
    %v230 = vmul.f32 %v221, 0.0
    %v231 = vadd.f32 %v158, %v230
    %v232 = vmax.f32 %v231, 0.0
    %vm233 = vcmask 257024
    %234 = vst.msk [vmem:[#allocation2] sm:$0xf] %vm233, %v232
    %v235 = vmul.f32 %v221, %v232
    %v237 = vrot.slane %v235, 4
    %v239 = vadd.f32 %v158, %v237
    %v240 = vmax.f32 %v239, 0.0
    %vm241 = vcmask 261124
    %242 = vst.msk [vmem:[#allocation2] sm:$0xf0] %vm241, %v240
    %v243 = vmul.f32 %v221, %v240
    %v245 = vrot.slane %v243, 4
    %v247 = vadd.f32 %v163, %v245
    %v248 = vmax.f32 %v247, 0.0
    %249 = vst.msk [vmem:[#allocation2 + $0x8] sm:$0xf] %vm233, %v248
    %v250 = vmul.f32 %v221, %v248
    %v252 = vrot.slane %v250, 4
    %v254 = vadd.f32 %v163, %v252
    %v255 = vmax.f32 %v254, 0.0
    %256 = vst.msk [vmem:[#allocation2 + $0x8] sm:$0xf0] %vm241, %v255
    %v257 = vmul.f32 %v221, %v255
    %v259 = vrot.slane %v257, 4
    %v261 = vadd.f32 %v168, %v259
    %v262 = vmax.f32 %v261, 0.0
    %263 = vst.msk [vmem:[#allocation2 + $0x10] sm:$0xf] %vm233, %v262
    %v264 = vmul.f32 %v221, %v262
    %v266 = vrot.slane %v264, 4
    %v268 = vadd.f32 %v168, %v266
    %v269 = vmax.f32 %v268, 0.0
    %270 = vst.msk [vmem:[#allocation2 + $0x10] sm:$0xf0] %vm241, %v269
    %v271 = vmul.f32 %v221, %v269
    %v273 = vrot.slane %v271, 4
    %v275 = vadd.f32 %v173, %v273
    %v276 = vmax.f32 %v275, 0.0
    %277 = vst.msk [vmem:[#allocation2 + $0x18] sm:$0xf] %vm233, %v276
    %v278 = vmul.f32 %v221, %v276
    %v280 = vrot.slane %v278, 4
    %v282 = vadd.f32 %v173, %v280
    %v283 = vmax.f32 %v282, 0.0
    %284 = vst.msk [vmem:[#allocation2 + $0x18] sm:$0xf0] %vm241, %v283
    %v285 = vmul.f32 %v221, %v283
    %v287 = vrot.slane %v285, 4
    %v289 = vadd.f32 %v178, %v287
    %v290 = vmax.f32 %v289, 0.0
    %291 = vst.msk [vmem:[#allocation2 + $0x20] sm:$0xf] %vm233, %v290
    %v292 = vmul.f32 %v221, %v290
    %v294 = vrot.slane %v292, 4
    %v296 = vadd.f32 %v178, %v294
    %v297 = vmax.f32 %v296, 0.0
    %298 = vst.msk [vmem:[#allocation2 + $0x20] sm:$0xf0] %vm241, %v297
    %v299 = vmul.f32 %v221, %v297
    %v301 = vrot.slane %v299, 4
    %v303 = vadd.f32 %v183, %v301
    %v304 = vmax.f32 %v303, 0.0
    %305 = vst.msk [vmem:[#allocation2 + $0x28] sm:$0xf] %vm233, %v304
    %v306 = vmul.f32 %v221, %v304
    %v308 = vrot.slane %v306, 4
    %v310 = vadd.f32 %v183, %v308
    %v311 = vmax.f32 %v310, 0.0
    %312 = vst.msk [vmem:[#allocation2 + $0x28] sm:$0xf0] %vm241, %v311
    %v313 = vmul.f32 %v221, %v311
    %v315 = vrot.slane %v313, 4
    %v317 = vadd.f32 %v188, %v315
    %v318 = vmax.f32 %v317, 0.0
    %319 = vst.msk [vmem:[#allocation2 + $0x30] sm:$0xf] %vm233, %v318
    %v320 = vmul.f32 %v221, %v318
    %v322 = vrot.slane %v320, 4
    %v324 = vadd.f32 %v188, %v322
    %v325 = vmax.f32 %v324, 0.0
    %326 = vst.msk [vmem:[#allocation2 + $0x30] sm:$0xf0] %vm241, %v325
    %v327 = vmul.f32 %v221, %v325
    %v329 = vrot.slane %v327, 4
    %v331 = vadd.f32 %v193, %v329
    %v332 = vmax.f32 %v331, 0.0
    %333 = vst.msk [vmem:[#allocation2 + $0x38] sm:$0xf] %vm233, %v332
    %v334 = vmul.f32 %v221, %v332
    %v336 = vrot.slane %v334, 4
    %v338 = vadd.f32 %v193, %v336
    %v339 = vmax.f32 %v338, 0.0
    %340 = vst.msk [vmem:[#allocation2 + $0x38] sm:$0xf0] %vm241, %v339
    %v341 = vmul.f32 %v221, %v339
    %v343 = vrot.slane %v341, 4
    %v345 = vadd.f32 %v198, %v343
    %v346 = vmax.f32 %v345, 0.0
    %347 = vst.msk [vmem:[#allocation2 + $0x40] sm:$0xf] %vm233, %v346
    %v348 = vmul.f32 %v221, %v346
    %v350 = vrot.slane %v348, 4
    %v352 = vadd.f32 %v198, %v350
    %v353 = vmax.f32 %v352, 0.0
    %354 = vst.msk [vmem:[#allocation2 + $0x40] sm:$0xf0] %vm241, %v353
    %v355 = vmul.f32 %v221, %v353
    %v357 = vrot.slane %v355, 4
    %v359 = vadd.f32 %v203, %v357
    %v360 = vmax.f32 %v359, 0.0
    %361 = vst.msk [vmem:[#allocation2 + $0x48] sm:$0xf] %vm233, %v360
    %v362 = vmul.f32 %v221, %v360
    %v364 = vrot.slane %v362, 4
    %v366 = vadd.f32 %v203, %v364
    %v367 = vmax.f32 %v366, 0.0
    %368 = vst.msk [vmem:[#allocation2 + $0x48] sm:$0xf0] %vm241, %v367
    %v369 = vmul.f32 %v221, %v367
    %v371 = vrot.slane %v369, 4
    %v373 = vadd.f32 %v208, %v371
    %v374 = vmax.f32 %v373, 0.0
    %375 = vst.msk [vmem:[#allocation2 + $0x50] sm:$0xf] %vm233, %v374
    %v376 = vmul.f32 %v221, %v374
    %v378 = vrot.slane %v376, 4
    %v380 = vadd.f32 %v208, %v378
    %v381 = vmax.f32 %v380, 0.0
    %382 = vst.msk [vmem:[#allocation2 + $0x50] sm:$0xf0] %vm241, %v381
    %v383 = vmul.f32 %v221, %v381
    %v385 = vrot.slane %v383, 4
    %v387 = vadd.f32 %v213, %v385
    %v388 = vmax.f32 %v387, 0.0
    %389 = vst.msk [vmem:[#allocation2 + $0x58] sm:$0xf] %vm233, %v388
    %v390 = vmul.f32 %v221, %v388
    %v392 = vrot.slane %v390, 4
    %v394 = vadd.f32 %v213, %v392
    %v395 = vmax.f32 %v394, 0.0
    %396 = vst.msk [vmem:[#allocation2 + $0x58] sm:$0xf0] %vm241, %v395
    %v397 = vld [vmem:[#allocation2] sm:$0xff]
    %v398 = vld [vmem:[#allocation2 + $0x8] sm:$0xff]
    %v399 = vld [vmem:[#allocation2 + $0x10] sm:$0xff]
    %v400 = vld [vmem:[#allocation2 + $0x18] sm:$0xff]
    %v401 = vld [vmem:[#allocation2 + $0x20] sm:$0xff]
    %v402 = vld [vmem:[#allocation2 + $0x28] sm:$0xff]
    %v403 = vld [vmem:[#allocation2 + $0x30] sm:$0xff]
    %v404 = vld [vmem:[#allocation2 + $0x38] sm:$0xff]
    %v405 = vld [vmem:[#allocation2 + $0x40] sm:$0xff]
    %v406 = vld [vmem:[#allocation2 + $0x48] sm:$0xff]
    %v407 = vld [vmem:[#allocation2 + $0x50] sm:$0xff]
    %v408 = vld [vmem:[#allocation2 + $0x58] sm:$0xff]
    %v409 = vld [vmem:[%s4] sm:$0xff]
    %v410 = vld [vmem:[%s4 + $0x8] sm:$0xff]
    %v411 = vld [vmem:[%s4 + $0x10] sm:$0xff]
    %v412 = vld [vmem:[%s4 + $0x18] sm:$0xff]
    %v413 = vld [vmem:[%s6] sm:$0x1]
    %v415 = vlaneseq
    %v416 = vshrl.u32 %v415, 7
    %v417 = vsub.s32 0, %v416
    %v418 = vrot.slane %v413, %v417
    %vm420 = vcmask 261120
    %v422 = vsel %vm420, %v397, 0
    %v425 = vsel %vm420, %v398, 0
    %v428 = vsel %vm420, %v399, 0
    %v431 = vsel %vm420, %v400, 0
    %v434 = vsel %vm420, %v401, 0
    %v437 = vsel %vm420, %v402, 0
    %v440 = vsel %vm420, %v403, 0
    %v443 = vsel %vm420, %v404, 0
    %v446 = vsel %vm420, %v405, 0
    %v449 = vsel %vm420, %v406, 0
    %v452 = vsel %vm420, %v407, 0
    %v455 = vsel %vm420, %v408, 0
    %457 = vmatprep.subr.mxu0 0.0
    %458 = vmatpush1.msra.mxu0 %v409
    %459 = vmatprep.subr.mxu0 0.0
    %460 = vmatpush1.msra.mxu0 %v410
    %461 = vmatprep.subr.mxu0 0.0
    %462 = vmatpush1.msra.mxu0 %v411
    %463 = vmatprep.subr.mxu0 0.0
    %464 = vmatpush1.msra.mxu0 %v412
    %465 = vmatprep.subr.mxu0 0.0
    %466 = vmatpush1.msra.mxu0 0.0
    %467 = vmatprep.subr.mxu0 0.0
    %468 = vmatpush1.msra.mxu0 0.0
    %469 = vmatprep.subr.mxu0 0.0
    %470 = vmatpush1.msra.mxu0 0.0
    %471 = vmatprep.subr.mxu0 0.0
    %472 = vmatpush1.msra.mxu0 0.0
    %473 = vmatprep.subr.mxu0 0.0
    %474 = vmatpush1.msra.mxu0 0.0
    %475 = vmatprep.subr.mxu0 0.0
    %476 = vmatpush1.msra.mxu0 0.0
    %477 = vmatprep.subr.mxu0 0.0
    %478 = vmatpush1.msra.mxu0 0.0
    %479 = vmatprep.subr.mxu0 0.0
    %480 = vmatpush1.msra.mxu0 0.0
    %481 = vmatprep.subr.mxu0 0.0
    %482 = vmatpush1.msra.mxu0 0.0
    %483 = vmatprep.subr.mxu0 0.0
    %484 = vmatpush1.msra.mxu0 0.0
    %485 = vmatprep.subr.mxu0 0.0
    %486 = vmatpush1.msra.mxu0 0.0
    %487 = vmatprep.subr.mxu0 0.0
    %488 = vmatpush1.msra.mxu0 0.0
    %489 = vmatprep.subr.mxu0 0.0
    %490 = vmatpush1.msra.mxu0 0.0
    %491 = vmatprep.subr.mxu0 0.0
    %492 = vmatpush1.msra.mxu0 0.0
    %493 = vmatprep.subr.mxu0 0.0
    %494 = vmatpush1.msra.mxu0 0.0
    %495 = vmatprep.subr.mxu0 0.0
    %496 = vmatpush1.msra.mxu0 0.0
    %497 = vmatprep.subr.mxu0 0.0
    %498 = vmatpush1.msra.mxu0 0.0
    %499 = vmatprep.subr.mxu0 0.0
    %500 = vmatpush1.msra.mxu0 0.0
    %501 = vmatprep.subr.mxu0 0.0
    %502 = vmatpush1.msra.mxu0 0.0
    %503 = vmatprep.subr.mxu0 0.0
    %504 = vmatpush1.msra.mxu0 0.0
    %505 = vmatprep.subr.mxu0 0.0
    %506 = vmatpush1.msra.mxu0 0.0
    %507 = vmatprep.subr.mxu0 0.0
    %508 = vmatpush1.msra.mxu0 0.0
    %509 = vmatprep.subr.mxu0 0.0
    %510 = vmatpush1.msra.mxu0 0.0
    %511 = vmatprep.subr.mxu0 0.0
    %512 = vmatpush1.msra.mxu0 0.0
    %513 = vmatprep.subr.mxu0 0.0
    %514 = vmatpush1.msra.mxu0 0.0
    %515 = vmatprep.subr.mxu0 0.0
    %516 = vmatpush1.msra.mxu0 0.0
    %517 = vmatprep.subr.mxu0 0.0
    %518 = vmatpush1.msra.mxu0 0.0
    %519 = vmatprep.subr.mxu0 0.0
    %520 = vmatpush1.msra.mxu0 0.0
    %521 = vmatprep.mubr.f32.mxu0 0.0
    %522 = vmatmul.mubr.f32.gmra.mrb[0].mxu0 %v422
    %v523 = vpop.f32.mrb[0].mxu0
    %v524 = vadd.f32 %v418, %v523
    %v525 = vpop.f32.mrb[0].mxu0
    %526 = vmatprep.mubr.f32.mxu0 0.0
    %527 = vmatmul.mubr.f32.gmra.mrb[0].mxu0 %v425
    %v528 = vpop.f32.mrb[0].mxu0
    %v529 = vadd.f32 %v418, %v528
    %v530 = vpop.f32.mrb[0].mxu0
    %531 = vmatprep.mubr.f32.mxu0 0.0
    %532 = vmatmul.mubr.f32.gmra.mrb[0].mxu0 %v428
    %v533 = vpop.f32.mrb[0].mxu0
    %v534 = vadd.f32 %v418, %v533
    %v535 = vpop.f32.mrb[0].mxu0
    %536 = vmatprep.mubr.f32.mxu0 0.0
    %537 = vmatmul.mubr.f32.gmra.mrb[0].mxu0 %v431
    %v538 = vpop.f32.mrb[0].mxu0
    %v539 = vadd.f32 %v418, %v538
    %v540 = vpop.f32.mrb[0].mxu0
    %541 = vmatprep.mubr.f32.mxu0 0.0
    %542 = vmatmul.mubr.f32.gmra.mrb[0].mxu0 %v434
    %v543 = vpop.f32.mrb[0].mxu0
    %v544 = vadd.f32 %v418, %v543
    %v545 = vpop.f32.mrb[0].mxu0
    %546 = vmatprep.mubr.f32.mxu0 0.0
    %547 = vmatmul.mubr.f32.gmra.mrb[0].mxu0 %v437
    %v548 = vpop.f32.mrb[0].mxu0
    %v549 = vadd.f32 %v418, %v548
    %v550 = vpop.f32.mrb[0].mxu0
    %551 = vmatprep.mubr.f32.mxu0 0.0
    %552 = vmatmul.mubr.f32.gmra.mrb[0].mxu0 %v440
    %v553 = vpop.f32.mrb[0].mxu0
    %v554 = vadd.f32 %v418, %v553
    %v555 = vpop.f32.mrb[0].mxu0
    %556 = vmatprep.mubr.f32.mxu0 0.0
    %557 = vmatmul.mubr.f32.gmra.mrb[0].mxu0 %v443
    %v558 = vpop.f32.mrb[0].mxu0
    %v559 = vadd.f32 %v418, %v558
    %v560 = vpop.f32.mrb[0].mxu0
    %561 = vmatprep.mubr.f32.mxu0 0.0
    %562 = vmatmul.mubr.f32.gmra.mrb[0].mxu0 %v446
    %v563 = vpop.f32.mrb[0].mxu0
    %v564 = vadd.f32 %v418, %v563
    %v565 = vpop.f32.mrb[0].mxu0
    %566 = vmatprep.mubr.f32.mxu0 0.0
    %567 = vmatmul.mubr.f32.gmra.mrb[0].mxu0 %v449
    %v568 = vpop.f32.mrb[0].mxu0
    %v569 = vadd.f32 %v418, %v568
    %v570 = vpop.f32.mrb[0].mxu0
    %571 = vmatprep.mubr.f32.mxu0 0.0
    %572 = vmatmul.mubr.f32.gmra.mrb[0].mxu0 %v452
    %v573 = vpop.f32.mrb[0].mxu0
    %v574 = vadd.f32 %v418, %v573
    %v575 = vpop.f32.mrb[0].mxu0
    %576 = vmatprep.mubr.f32.mxu0 0.0
    %577 = vmatmul.mubr.f32.gmra.mrb[0].mxu0 %v455
    %v578 = vpop.f32.mrb[0].mxu0
    %v579 = vadd.f32 %v418, %v578
    %v580 = vpop.f32.mrb[0].mxu0
    %581 = vdwg.mxu0
    %v582 = vmul.f32 %v228, 0.0
    %v583 = vadd.f32 %v524, %v582
    %v584 = vmax.f32 %v583, 0.0
    %v585 = vmul.f32 %v228, %v584
    %v587 = vrot.slane %v585, 4
    %v589 = vadd.f32 %v524, %v587
    %v590 = vmax.f32 %v589, 0.0
    %v591 = vmul.f32 %v228, %v590
    %v593 = vrot.slane %v591, 4
    %v595 = vadd.f32 %v529, %v593
    %v596 = vmax.f32 %v595, 0.0
    %v597 = vmul.f32 %v228, %v596
    %v599 = vrot.slane %v597, 4
    %v601 = vadd.f32 %v529, %v599
    %v602 = vmax.f32 %v601, 0.0
    %v603 = vmul.f32 %v228, %v602
    %v605 = vrot.slane %v603, 4
    %v607 = vadd.f32 %v534, %v605
    %v608 = vmax.f32 %v607, 0.0
    %v609 = vmul.f32 %v228, %v608
    %v611 = vrot.slane %v609, 4
    %v613 = vadd.f32 %v534, %v611
    %v614 = vmax.f32 %v613, 0.0
    %v615 = vmul.f32 %v228, %v614
    %v617 = vrot.slane %v615, 4
    %v619 = vadd.f32 %v539, %v617
    %v620 = vmax.f32 %v619, 0.0
    %v621 = vmul.f32 %v228, %v620
    %v623 = vrot.slane %v621, 4
    %v625 = vadd.f32 %v539, %v623
    %v626 = vmax.f32 %v625, 0.0
    %v627 = vmul.f32 %v228, %v626
    %v629 = vrot.slane %v627, 4
    %v631 = vadd.f32 %v544, %v629
    %v632 = vmax.f32 %v631, 0.0
    %v633 = vmul.f32 %v228, %v632
    %v635 = vrot.slane %v633, 4
    %v637 = vadd.f32 %v544, %v635
    %v638 = vmax.f32 %v637, 0.0
    %v639 = vmul.f32 %v228, %v638
    %v641 = vrot.slane %v639, 4
    %v643 = vadd.f32 %v549, %v641
    %v644 = vmax.f32 %v643, 0.0
    %v645 = vmul.f32 %v228, %v644
    %v647 = vrot.slane %v645, 4
    %v649 = vadd.f32 %v549, %v647
    %v650 = vmax.f32 %v649, 0.0
    %v651 = vmul.f32 %v228, %v650
    %v653 = vrot.slane %v651, 4
    %v655 = vadd.f32 %v554, %v653
    %v656 = vmax.f32 %v655, 0.0
    %v657 = vmul.f32 %v228, %v656
    %v659 = vrot.slane %v657, 4
    %v661 = vadd.f32 %v554, %v659
    %v662 = vmax.f32 %v661, 0.0
    %v663 = vmul.f32 %v228, %v662
    %v665 = vrot.slane %v663, 4
    %v667 = vadd.f32 %v559, %v665
    %v668 = vmax.f32 %v667, 0.0
    %v669 = vmul.f32 %v228, %v668
    %v671 = vrot.slane %v669, 4
    %v673 = vadd.f32 %v559, %v671
    %v674 = vmax.f32 %v673, 0.0
    %v675 = vmul.f32 %v228, %v674
    %v677 = vrot.slane %v675, 4
    %v679 = vadd.f32 %v564, %v677
    %v680 = vmax.f32 %v679, 0.0
    %v681 = vmul.f32 %v228, %v680
    %v683 = vrot.slane %v681, 4
    %v685 = vadd.f32 %v564, %v683
    %v686 = vmax.f32 %v685, 0.0
    %v687 = vmul.f32 %v228, %v686
    %v689 = vrot.slane %v687, 4
    %v691 = vadd.f32 %v569, %v689
    %v692 = vmax.f32 %v691, 0.0
    %v693 = vmul.f32 %v228, %v692
    %v695 = vrot.slane %v693, 4
    %v697 = vadd.f32 %v569, %v695
    %v698 = vmax.f32 %v697, 0.0
    %v699 = vmul.f32 %v228, %v698
    %v701 = vrot.slane %v699, 4
    %v703 = vadd.f32 %v574, %v701
    %v704 = vmax.f32 %v703, 0.0
    %v705 = vmul.f32 %v228, %v704
    %v707 = vrot.slane %v705, 4
    %v709 = vadd.f32 %v574, %v707
    %v710 = vmax.f32 %v709, 0.0
    %v711 = vmul.f32 %v228, %v710
    %v713 = vrot.slane %v711, 4
    %v715 = vadd.f32 %v579, %v713
    %v716 = vmax.f32 %v715, 0.0
    %v717 = vmul.f32 %v228, %v716
    %v719 = vrot.slane %v717, 4
    %v721 = vadd.f32 %v579, %v719
    %v722 = vmax.f32 %v721, 0.0
    %v723 = vld [vmem:[%s7] sm:$0xff]
    %v724 = vld [vmem:[%s7 + $0x8] sm:$0xff]
    %v725 = vld [vmem:[%s7 + $0x10] sm:$0xff]
    %v726 = vld [vmem:[%s7 + $0x18] sm:$0xff]
    %v727 = vld [vmem:[%s8] sm:$0x1]
    %v729 = vlaneseq
    %v730 = vshrl.u32 %v729, 7
    %v731 = vsub.s32 0, %v730
    %v732 = vrot.slane %v727, %v731
    %v735 = vrot.slane %v722, 4
    %v736 = vsel %vm420, %v735, 0
    %738 = vmatprep.subr.mxu0 0.0
    %739 = vmatpush1.msra.mxu0 %v723
    %740 = vmatprep.subr.mxu0 0.0
    %741 = vmatpush1.msra.mxu0 %v724
    %742 = vmatprep.subr.mxu0 0.0
    %743 = vmatpush1.msra.mxu0 %v725
    %744 = vmatprep.subr.mxu0 0.0
    %745 = vmatpush1.msra.mxu0 %v726
    %746 = vmatprep.subr.mxu0 0.0
    %747 = vmatpush1.msra.mxu0 0.0
    %748 = vmatprep.subr.mxu0 0.0
    %749 = vmatpush1.msra.mxu0 0.0
    %750 = vmatprep.subr.mxu0 0.0
    %751 = vmatpush1.msra.mxu0 0.0
    %752 = vmatprep.subr.mxu0 0.0
    %753 = vmatpush1.msra.mxu0 0.0
    %754 = vmatprep.subr.mxu0 0.0
    %755 = vmatpush1.msra.mxu0 0.0
    %756 = vmatprep.subr.mxu0 0.0
    %757 = vmatpush1.msra.mxu0 0.0
    %758 = vmatprep.subr.mxu0 0.0
    %759 = vmatpush1.msra.mxu0 0.0
    %760 = vmatprep.subr.mxu0 0.0
    %761 = vmatpush1.msra.mxu0 0.0
    %762 = vmatprep.subr.mxu0 0.0
    %763 = vmatpush1.msra.mxu0 0.0
    %764 = vmatprep.subr.mxu0 0.0
    %765 = vmatpush1.msra.mxu0 0.0
    %766 = vmatprep.subr.mxu0 0.0
    %767 = vmatpush1.msra.mxu0 0.0
    %768 = vmatprep.subr.mxu0 0.0
    %769 = vmatpush1.msra.mxu0 0.0
    %770 = vmatprep.subr.mxu0 0.0
    %771 = vmatpush1.msra.mxu0 0.0
    %772 = vmatprep.subr.mxu0 0.0
    %773 = vmatpush1.msra.mxu0 0.0
    %774 = vmatprep.subr.mxu0 0.0
    %775 = vmatpush1.msra.mxu0 0.0
    %776 = vmatprep.subr.mxu0 0.0
    %777 = vmatpush1.msra.mxu0 0.0
    %778 = vmatprep.subr.mxu0 0.0
    %779 = vmatpush1.msra.mxu0 0.0
    %780 = vmatprep.subr.mxu0 0.0
    %781 = vmatpush1.msra.mxu0 0.0
    %782 = vmatprep.subr.mxu0 0.0
    %783 = vmatpush1.msra.mxu0 0.0
    %784 = vmatprep.subr.mxu0 0.0
    %785 = vmatpush1.msra.mxu0 0.0
    %786 = vmatprep.subr.mxu0 0.0
    %787 = vmatpush1.msra.mxu0 0.0
    %788 = vmatprep.subr.mxu0 0.0
    %789 = vmatpush1.msra.mxu0 0.0
    %790 = vmatprep.subr.mxu0 0.0
    %791 = vmatpush1.msra.mxu0 0.0
    %792 = vmatprep.subr.mxu0 0.0
    %793 = vmatpush1.msra.mxu0 0.0
    %794 = vmatprep.subr.mxu0 0.0
    %795 = vmatpush1.msra.mxu0 0.0
    %796 = vmatprep.subr.mxu0 0.0
    %797 = vmatpush1.msra.mxu0 0.0
    %798 = vmatprep.subr.mxu0 0.0
    %799 = vmatpush1.msra.mxu0 0.0
    %800 = vmatprep.subr.mxu0 0.0
    %801 = vmatpush1.msra.mxu0 0.0
    %802 = vmatprep.mubr.f32.mxu0 0.0
    %803 = vmatmul.mubr.f32.gmra.mrb[0].mxu0 %v736
    %v804 = vpop.f32.mrb[0].mxu0
    %v805 = vadd.f32 %v732, %v804
    %v806 = vpop.f32.mrb[0].mxu0
    %807 = vdwg.mxu0
    %vm808 = vcmask 76800
    %809 = vst.msk [vmem:[#allocation3] sm:$0xf] %vm808, %v805
    // Predicated region
    $region38: #{tpu_custom_call.1} parent=1 // pred_check
      _
    $region39: #{tpu_custom_call.1} parent=1 // pred_check_branch
      %811 = sbr.rel (0) target = $region41
    $region40: #{tpu_custom_call.1} parent=1 // pred_region
      %s813 = ssub.s32 64, 64
      %814 = vsyncadd [#allocation4], %s813
      %s816 = sshll.u32 [#allocation3], 4
      %s817 = int_to_ptr.vmem [resolvable:$true] %s816
      %819 = dma.vmem_to_hbm [thread:$0]  %s817, 64, %s9, [#allocation4]
    $region41: #{tpu_custom_call.1} parent=1 // pred_fallthru
      _
    // Predicated region
    $region42: #{tpu_custom_call.1} parent=1 // pred_check
      _
    $region43: #{tpu_custom_call.1} parent=1 // pred_check_branch
      %821 = sbr.rel (0) target = $region45
    $region44: #{tpu_custom_call.1} parent=1 // pred_region
      %822 = dma.done [#allocation4], 64
    $region45: #{tpu_custom_call.1} parent=1 // pred_fallthru
      _
    %823 = vsyncpa [#allocation4], 1

</llo_original>
